<compile_context>
chip_gen: v6e
topology: v6e:2x2x1
jax: 0.10.0
libtpu: 0.0.40
codegen_flags: <defaults>
</compile_context>

<pallas_src>
import jax
import jax.numpy as jnp
import numpy as np
from jax.experimental import pallas as pl
from jax.experimental.pallas import tpu as pltpu  # noqa: F401  (TPU backend)


# ----------------------------- Pallas kernel ------------------------------ #
def _film_fused_kernel(x_ref, w1_ref, w2_ref, aux_ref, out_ref):
    # DenseBlock hot path for all heads at once: two MXU matmuls + VPU epilogue.
    # x_ref: (B, P+1) with trailing ones column (b1 folded into w1).
    h = jnp.dot(x_ref[...], w1_ref[...], preferred_element_type=jnp.float32)
    h = jnp.maximum(h, 0.0)                                   # ReLU
    g = jnp.dot(h, w2_ref[...], preferred_element_type=jnp.float32)

    aux = aux_ref[...]          # (4, T): rows = [b2, reg, init, weight_mask]
    b2 = aux[0:1, :]
    reg = aux[1:2, :]
    init = aux[2:3, :]
    mask = aux[3:4, :]

    g = (g + b2) * reg          # generated (squeezed) * regularizer
    # weight head: init * (g + 1)   ;   bias head: init + g
    # branch-free:  out = init + g * (mask*init + (1-mask))
    sel = mask * init + (1.0 - mask)
    out_ref[...] = init + g * sel


def _full_spec(shape):
    # Full-array block (block_shape == array dims satisfies TPU tiling rules
    # for the oddly-sized dims; everything else is already (8,128)-friendly).
    return pl.BlockSpec(shape, lambda: (0,) * len(shape))


def _make_fused_forward(names, offsets, sizes):
    """Builds a jitted forward: (x, w1_aug, w2_blk, aux) -> {name: (size,)}."""

    def fwd(x, w1_aug, w2_blk, aux):
        x = x.astype(jnp.float32)
        B = x.shape[0]
        T = aux.shape[1]
        x_aug = jnp.concatenate([x, jnp.ones((B, 1), jnp.float32)], axis=1)
        out = pl.pallas_call(
            _film_fused_kernel,
            out_shape=jax.ShapeDtypeStruct((B, T), jnp.float32),
            in_specs=[
                _full_spec(x_aug.shape),
                _full_spec(w1_aug.shape),
                _full_spec(w2_blk.shape),
                _full_spec(aux.shape),
            ],
            out_specs=_full_spec((B, T)),
        )(x_aug, w1_aug, w2_blk, aux)
        # slice the lane-dense slab back into per-head FiLM vectors (.squeeze())
        return {
            name: out[0, off:off + size]
            for name, off, size in zip(names, offsets, sizes)
        }

    return jax.jit(fwd)


# --------------------------- module equivalent ----------------------------- #
class FilmParameterGenerator:
    def __init__(self, film_parameter_sizes, initial_film_parameters,
                 pooled_size, hidden_size, key):
        self.initial_film_parameters = initial_film_parameters
        self.film_parameter_names = sorted(initial_film_parameters.keys())

        names = self.film_parameter_names
        num_heads = len(names)
        sizes = [int(film_parameter_sizes[n]) for n in names]
        offsets = list(np.cumsum([0] + sizes[:-1]))
        total_out = int(sum(sizes))
        H = hidden_size

        w1_cols, b1_cols = [], []
        w2_blk = np.zeros((num_heads * H, total_out), np.float32)
        b2_cat = np.zeros((total_out,), np.float32)
        reg_cat = np.zeros((total_out,), np.float32)
        init_cat = np.zeros((total_out,), np.float32)
        mask_cat = np.zeros((total_out,), np.float32)

        for h, (name, size, off) in enumerate(zip(names, sizes, offsets)):
            key, k1, k2, k3, k4, k5 = jax.random.split(key, 6)
            w1 = 0.05 * jax.random.normal(k1, (pooled_size, H), jnp.float32)
            b1 = 0.05 * jax.random.normal(k2, (H,), jnp.float32)
            w2 = 0.05 * jax.random.normal(k3, (H, size), jnp.float32)
            b2 = 0.05 * jax.random.normal(k4, (size,), jnp.float32)
            # nn.init.normal_(empty(out_size), 0, 0.001)
            reg = 0.001 * jax.random.normal(k5, (size,), jnp.float32)

            w1_cols.append(np.asarray(w1))
            b1_cols.append(np.asarray(b1))
            w2_blk[h * H:(h + 1) * H, off:off + size] = np.asarray(w2)
            b2_cat[off:off + size] = np.asarray(b2)
            reg_cat[off:off + size] = np.asarray(reg)
            init_cat[off:off + size] = np.asarray(
                initial_film_parameters[name], np.float32)
            mask_cat[off:off + size] = 1.0 if 'weight' in name else 0.0
            # keep per-head params around for the pure-JAX reference
            self.__dict__.setdefault('per_head', {})[name] = (
                jnp.asarray(w1), jnp.asarray(b1), jnp.asarray(w2),
                jnp.asarray(b2), jnp.asarray(reg))

        # b1 folded into W1 via an augmented ones-column on x.
        w1_stacked = np.concatenate(w1_cols, axis=1)                # (P, heads*H)
        b1_stacked = np.concatenate(b1_cols)[None, :]               # (1, heads*H)
        self.w1_aug = jnp.asarray(np.concatenate([w1_stacked, b1_stacked], axis=0))
        self.w2_blk = jnp.asarray(w2_blk)
        self.aux = jnp.asarray(np.stack([b2_cat, reg_cat, init_cat, mask_cat]))

        # l2 term is independent of x -> hoisted out of forward.
        self.l2_term = jnp.sum(jnp.asarray(reg_cat) ** 2)

        self._forward = _make_fused_forward(names, offsets, sizes)

    def regularization_term(self):
        return self.l2_term

    def __call__(self, x):
        # one fused, jitted pallas_call for every FiLM head
        return self._forward(x, self.w1_aug, self.w2_blk, self.aux)


# ----------------------------- pure-JAX reference -------------------------- #
def _reference(gen, x):
    out = {}
    for name in gen.film_parameter_names:
        w1, b1, w2, b2, reg = gen.per_head[name]
        init = gen.initial_film_parameters[name]
        h = jnp.maximum(x @ w1 + b1, 0.0)
        g = (h @ w2 + b2)[0]  # squeeze
        if 'weight' in name:
            out[name] = init * (g * reg + jnp.ones_like(reg))
        else:
            out[name] = init + g * reg
    return out


# ---------------------------------- main ----------------------------------- #
if __name__ == "__main__":
    key = jax.random.PRNGKey(0)

    pooled_size = 32
    hidden_size = 32
    film_parameter_sizes = {
        "layer1_gamma_weight": 64,
        "layer1_beta_bias": 64,
        "layer2_gamma_weight": 128,
        "layer2_beta_bias": 128,
    }

    key, ki, kx, kp = jax.random.split(key, 4)
    init_keys = jax.random.split(ki, len(film_parameter_sizes))
    initial_film_parameters = {}
    for k, (name, size) in zip(init_keys, sorted(film_parameter_sizes.items())):
        base = jnp.ones((size,), jnp.float32) if 'weight' in name \
            else jnp.zeros((size,), jnp.float32)
        initial_film_parameters[name] = base + 0.1 * jax.random.normal(
            k, (size,), jnp.float32)

    generator = FilmParameterGenerator(
        film_parameter_sizes, initial_film_parameters,
        pooled_size, hidden_size, kp)

    # x: pooled task representation, shape (1, pooled_size)
    x = jax.random.normal(kx, (1, pooled_size), jnp.float32)

    film_dict = generator(x)
    film_dict = jax.tree_util.tree_map(jax.block_until_ready, film_dict)
    l2 = jax.block_until_ready(generator.regularization_term())

    # correctness check vs pure-JAX (un-fused) reference
    ref = _reference(generator, x)
    for name in generator.film_parameter_names:
        np.testing.assert_allclose(np.asarray(film_dict[name]),
                                   np.asarray(ref[name]),
                                   rtol=1e-5, atol=1e-5)
        assert film_dict[name].shape == initial_film_parameters[name].shape

    print("KERNEL_OK")
</pallas_src>

<mosaic_0001>
module attributes {stable_mosaic.version = 11 : i64} {
  func.func @_film_fused_kernel(%arg0: memref<1x33xf32, #tpu.memory_space<vmem>>, %arg1: memref<33x128xf32, #tpu.memory_space<vmem>>, %arg2: memref<128x384xf32, #tpu.memory_space<vmem>>, %arg3: memref<4x384xf32, #tpu.memory_space<vmem>>, %arg4: memref<1x384xf32, #tpu.memory_space<vmem>>) attributes {dimension_semantics = [], scalar_prefetch = 0 : i64, scratch_operands = 0 : i64, tpu.core_type = #tpu.core_type<tc>} {
    %c0 = arith.constant 0 : index
    %c0_0 = arith.constant 0 : index
    %0 = vector.load %arg0[%c0, %c0_0] : memref<1x33xf32, #tpu.memory_space<vmem>>, vector<1x33xf32>
    %c0_1 = arith.constant 0 : index
    %c0_2 = arith.constant 0 : index
    %1 = vector.load %arg1[%c0_1, %c0_2] : memref<33x128xf32, #tpu.memory_space<vmem>>, vector<33x128xf32>
    %cst = arith.constant dense<0.000000e+00> : vector<1x128xf32>
    %2 = tpu.matmul %0, %1, %cst {dimension_numbers = #tpu.dot_dimension_numbers<[1], [0], [0], [1], [0, 0, 1, 1], [], []>} : vector<1x33xf32>, vector<33x128xf32>, vector<1x128xf32> -> vector<1x128xf32>
    %cst_3 = arith.constant 0.000000e+00 : f32
    %3 = vector.broadcast %cst_3 : f32 to vector<1x128xf32>
    %4 = arith.maximumf %2, %3 : vector<1x128xf32>
    %c0_4 = arith.constant 0 : index
    %c0_5 = arith.constant 0 : index
    %5 = vector.load %arg2[%c0_4, %c0_5] : memref<128x384xf32, #tpu.memory_space<vmem>>, vector<128x384xf32>
    %cst_6 = arith.constant dense<0.000000e+00> : vector<1x384xf32>
    %6 = tpu.matmul %4, %5, %cst_6 {dimension_numbers = #tpu.dot_dimension_numbers<[1], [0], [0], [1], [0, 0, 1, 1], [], []>} : vector<1x128xf32>, vector<128x384xf32>, vector<1x384xf32> -> vector<1x384xf32>
    %c0_7 = arith.constant 0 : index
    %c0_8 = arith.constant 0 : index
    %7 = vector.load %arg3[%c0_7, %c0_8] : memref<4x384xf32, #tpu.memory_space<vmem>>, vector<4x384xf32>
    %8 = vector.extract_strided_slice %7 {offsets = [0, 0], sizes = [1, 384], strides = [1, 1]} : vector<4x384xf32> to vector<1x384xf32>
    %9 = vector.extract_strided_slice %7 {offsets = [1, 0], sizes = [1, 384], strides = [1, 1]} : vector<4x384xf32> to vector<1x384xf32>
    %10 = vector.extract_strided_slice %7 {offsets = [2, 0], sizes = [1, 384], strides = [1, 1]} : vector<4x384xf32> to vector<1x384xf32>
    %11 = vector.extract_strided_slice %7 {offsets = [3, 0], sizes = [1, 384], strides = [1, 1]} : vector<4x384xf32> to vector<1x384xf32>
    %12 = arith.addf %6, %8 : vector<1x384xf32>
    %13 = arith.mulf %12, %9 : vector<1x384xf32>
    %14 = arith.mulf %11, %10 : vector<1x384xf32>
    %cst_9 = arith.constant 1.000000e+00 : f32
    %15 = vector.broadcast %cst_9 : f32 to vector<1x384xf32>
    %16 = arith.subf %15, %11 : vector<1x384xf32>
    %17 = arith.addf %14, %16 : vector<1x384xf32>
    %18 = arith.mulf %13, %17 : vector<1x384xf32>
    %19 = arith.addf %10, %18 : vector<1x384xf32>
    %c0_10 = arith.constant 0 : index
    %c0_11 = arith.constant 0 : index
    %20 = vector.load %arg4[%c0_10, %c0_11] : memref<1x384xf32, #tpu.memory_space<vmem>>, vector<1x384xf32>
    tpu.vector_store %arg4[%c0_10, %c0_11], %19 {strides = array<i32>} : memref<1x384xf32, #tpu.memory_space<vmem>>, vector<1x384xf32>,
    return
  }
}

</mosaic_0001>

<llo_original>
// kernel: fwd.1
$region0: #{fwd.1}
  #allocation0 [shape = 'u32[]', space=smem, size = 0x4, offset = 0x4, fixed_abs, tag = 'smem constant byte address 0x4 - core index']
  #allocation1 [shape = 'u32[144,128]{1,0:T(1,128)}', space=vmem, size = 0x12000, scoped, tag = 'internal scratch']
  %s0 = inlined_call_operand.vmem [shape: f32[1,33], index: 0, kind: input, shape index: {}]
  %s1 = inlined_call_operand.hbm [shape: f32[33,128], index: 1, kind: input, shape index: {}]
  %s2 = inlined_call_operand.hbm [shape: f32[128,384], index: 2, kind: input, shape index: {}]
  %s3 = inlined_call_operand.hbm [shape: f32[4,384], index: 3, kind: input, shape index: {}]
  %s4 = inlined_call_operand.vmem [shape: f32[1,384], index: 4, kind: output, shape index: {}]
  %s5 = sld [smem:[#allocation0]]
  $region38: #{fwd.1} parent=0
    _
  %s7 = ssub.s32 1, %s5
  %s8 = scalar_select 0, %s7, %s5
  $region1: #{fwd.1} parent=0
    #allocation2 [shape = 'u8[20480]{0}', space=vmem, size = 0x5000, scoped, tag = 'input window, operand 1, single buffered']
    #allocation3 [shape = 's32[1]{0}', space=sflag, size = 0x4, scoped, tag = 'scoped memory for fwd.1']
    #allocation4 [shape = 'u8[196608]{0}', space=vmem, size = 0x30000, scoped, tag = 'input window, operand 2, single buffered']
    #allocation5 [shape = 's32[1]{0}', space=sflag, size = 0x4, scoped, tag = 'scoped memory for fwd.1']
    #allocation6 [shape = 'u8[6144]{0}', space=vmem, size = 0x1800, scoped, tag = 'input window, operand 3, single buffered']
    %9 = vsyncpa [#allocation3], 0
    %10 = vsyncpa [#allocation5], 0
    // Predicated region
    $region2: #{fwd.1} parent=1 // pred_check
      _
    $region3: #{fwd.1} parent=1 // pred_check_branch
      %12 = sbr.rel (0) target = $region5
    $region4: #{fwd.1} parent=1 // pred_region
      _
    $region5: #{fwd.1} parent=1 // pred_fallthru
      _
    // Predicated region
    $region6: #{fwd.1} parent=1 // pred_check
      _
    $region7: #{fwd.1} parent=1 // pred_check_branch
      %14 = sbr.rel (0) target = $region9
    $region8: #{fwd.1} parent=1 // pred_region
      %s16 = ssub.s32 640, 640
      %17 = vsyncadd [#allocation3], %s16
      %s18 = sshll.u32 [#allocation2], 4
      %s19 = int_to_ptr.vmem [resolvable:$true] %s18
      %24 = dma.hbm_to_vmem [thread:$0]  %s1, 640, %s19, [#allocation3], 128, 128, 8
    $region9: #{fwd.1} parent=1 // pred_fallthru
      _
    // Predicated region
    $region10: #{fwd.1} parent=1 // pred_check
      _
    $region11: #{fwd.1} parent=1 // pred_check_branch
      %26 = sbr.rel (0) target = $region13
    $region12: #{fwd.1} parent=1 // pred_region
      %s28 = ssub.s32 6144, 6144
      %29 = vsyncadd [#allocation5], %s28
      %s30 = sshll.u32 [#allocation4], 4
      %s31 = int_to_ptr.vmem [resolvable:$true] %s30
      %36 = dma.hbm_to_vmem [thread:$0]  %s2, 6144, %s31, [#allocation5], 384, 384, 24
    $region13: #{fwd.1} parent=1 // pred_fallthru
      _
    // Predicated region
    $region14: #{fwd.1} parent=1 // pred_check
      _
    $region15: #{fwd.1} parent=1 // pred_check_branch
      %38 = sbr.rel (0) target = $region17
    $region16: #{fwd.1} parent=1 // pred_region
      %s40 = ssub.s32 192, 192
      %41 = vsyncadd [#allocation5], %s40
      %s43 = sshll.u32 [#allocation6], 4
      %s44 = int_to_ptr.vmem [resolvable:$true] %s43
      %46 = dma.hbm_to_vmem [thread:$0]  %s3, 192, %s44, [#allocation5]
    $region17: #{fwd.1} parent=1 // pred_fallthru
      _
    // Predicated region
    $region18: #{fwd.1} parent=1 // pred_check
      _
    $region19: #{fwd.1} parent=1 // pred_check_branch
      %48 = sbr.rel (0) target = $region21
    $region20: #{fwd.1} parent=1 // pred_region
      %49 = dma.done [#allocation3], 640
    $region21: #{fwd.1} parent=1 // pred_fallthru
      _
    // Predicated region
    $region22: #{fwd.1} parent=1 // pred_check
      _
    $region23: #{fwd.1} parent=1 // pred_check_branch
      %51 = sbr.rel (0) target = $region25
    $region24: #{fwd.1} parent=1 // pred_region
      %52 = dma.done [#allocation5], 6144
    $region25: #{fwd.1} parent=1 // pred_fallthru
      _
    // Predicated region
    $region26: #{fwd.1} parent=1 // pred_check
      _
    $region27: #{fwd.1} parent=1 // pred_check_branch
      %54 = sbr.rel (0) target = $region29
    $region28: #{fwd.1} parent=1 // pred_region
      %55 = dma.done [#allocation5], 192
    $region29: #{fwd.1} parent=1 // pred_fallthru
      _
    %v56 = vld [vmem:[%s0] sm:$0x1]
    %v57 = vld [vmem:[#allocation2] sm:$0xff]
    %v58 = vld [vmem:[#allocation2 + $0x8] sm:$0xff]
    %v59 = vld [vmem:[#allocation2 + $0x10] sm:$0xff]
    %v60 = vld [vmem:[#allocation2 + $0x18] sm:$0xff]
    %v61 = vld [vmem:[#allocation2 + $0x20] sm:$0x1]
    %vm62 = vcmask 269312
    %v64 = vsel %vm62, %v56, 0
    %vm66 = vcmask 1040384
    %v68 = vsel %vm66, %v61, 0
    %70 = vmatprep.subr.mxu0 0.0
    %71 = vmatpush1.msra.mxu0 0.0
    %72 = vmatprep.subr.mxu0 0.0
    %73 = vmatpush1.msra.mxu0 0.0
    %74 = vmatprep.subr.mxu0 0.0
    %75 = vmatpush1.msra.mxu0 0.0
    %76 = vmatprep.subr.mxu0 0.0
    %77 = vmatpush1.msra.mxu0 0.0
    %78 = vmatprep.subr.mxu0 0.0
    %79 = vmatpush1.msra.mxu0 0.0
    %80 = vmatprep.subr.mxu0 0.0
    %81 = vmatpush1.msra.mxu0 0.0
    %82 = vmatprep.subr.mxu0 0.0
    %83 = vmatpush1.msra.mxu0 0.0
    %84 = vmatprep.subr.mxu0 0.0
    %85 = vmatpush1.msra.mxu0 0.0
    %86 = vmatprep.subr.mxu0 0.0
    %87 = vmatpush1.msra.mxu0 0.0
    %88 = vmatprep.subr.mxu0 0.0
    %89 = vmatpush1.msra.mxu0 0.0
    %90 = vmatprep.subr.mxu0 0.0
    %91 = vmatpush1.msra.mxu0 0.0
    %92 = vmatprep.subr.mxu0 0.0
    %93 = vmatpush1.msra.mxu0 %v68
    %94 = vmatprep.subr.mxu0 0.0
    %95 = vmatpush1.msra.mxu0 %v60
    %96 = vmatprep.subr.mxu0 0.0
    %97 = vmatpush1.msra.mxu0 %v59
    %98 = vmatprep.subr.mxu0 0.0
    %99 = vmatpush1.msra.mxu0 %v58
    %100 = vmatprep.subr.mxu0 0.0
    %101 = vmatpush1.msra.mxu0 %v57
    %102 = vmatprep.subr.mxu0 0.0
    %103 = vmatpush2.msra.mxu0 0.0
    %104 = vmatprep.subr.mxu0 0.0
    %105 = vmatpush2.msra.mxu0 0.0
    %106 = vmatprep.subr.mxu0 0.0
    %107 = vmatpush2.msra.mxu0 0.0
    %108 = vmatprep.subr.mxu0 0.0
    %109 = vmatpush2.msra.mxu0 0.0
    %110 = vmatprep.subr.mxu0 0.0
    %111 = vmatpush2.msra.mxu0 0.0
    %112 = vmatprep.subr.mxu0 0.0
    %113 = vmatpush2.msra.mxu0 0.0
    %114 = vmatprep.subr.mxu0 0.0
    %115 = vmatpush2.msra.mxu0 0.0
    %116 = vmatprep.subr.mxu0 0.0
    %117 = vmatpush2.msra.mxu0 0.0
    %118 = vmatprep.subr.mxu0 0.0
    %119 = vmatpush2.msra.mxu0 0.0
    %120 = vmatprep.subr.mxu0 0.0
    %121 = vmatpush2.msra.mxu0 0.0
    %122 = vmatprep.subr.mxu0 0.0
    %123 = vmatpush2.msra.mxu0 0.0
    %124 = vmatprep.subr.mxu0 0.0
    %125 = vmatpush2.msra.mxu0 0.0
    %126 = vmatprep.subr.mxu0 0.0
    %127 = vmatpush2.msra.mxu0 0.0
    %128 = vmatprep.subr.mxu0 0.0
    %129 = vmatpush2.msra.mxu0 0.0
    %130 = vmatprep.subr.mxu0 0.0
    %131 = vmatpush2.msra.mxu0 0.0
    %132 = vmatprep.subr.mxu0 0.0
    %133 = vmatpush2.msra.mxu0 0.0
    %134 = vmatprep.mubr.f32.mxu0 0.0
    %135 = vmatmul.mubr.f32.gmra.mxu0 %v64
    %v136 = vpop.f32.mrf.mxu0
    %v137 = vadd.f32 0.0, %v136
    %v138 = vpop.f32.mrf.mxu0
    %139 = vdwg.mxu0
    %v140 = vmax.f32 %v137, 0.0
    %v141 = vld [vmem:[#allocation4] sm:$0xff]
    %v142 = vld [vmem:[#allocation4 + $0x8] sm:$0xff]
    %v143 = vld [vmem:[#allocation4 + $0x10] sm:$0xff]
    %v144 = vld [vmem:[#allocation4 + $0x18] sm:$0xff]
    %v145 = vld [vmem:[#allocation4 + $0x20] sm:$0xff]
    %v146 = vld [vmem:[#allocation4 + $0x28] sm:$0xff]
    %v147 = vld [vmem:[#allocation4 + $0x30] sm:$0xff]
    %v148 = vld [vmem:[#allocation4 + $0x38] sm:$0xff]
    %v149 = vld [vmem:[#allocation4 + $0x40] sm:$0xff]
    %v150 = vld [vmem:[#allocation4 + $0x48] sm:$0xff]
    %v151 = vld [vmem:[#allocation4 + $0x50] sm:$0xff]
    %v152 = vld [vmem:[#allocation4 + $0x58] sm:$0xff]
    %v153 = vld [vmem:[#allocation4 + $0x60] sm:$0xff]
    %v154 = vld [vmem:[#allocation4 + $0x68] sm:$0xff]
    %v155 = vld [vmem:[#allocation4 + $0x70] sm:$0xff]
    %v156 = vld [vmem:[#allocation4 + $0x78] sm:$0xff]
    %v157 = vld [vmem:[#allocation4 + $0x80] sm:$0xff]
    %v158 = vld [vmem:[#allocation4 + $0x88] sm:$0xff]
    %v159 = vld [vmem:[#allocation4 + $0x90] sm:$0xff]
    %v160 = vld [vmem:[#allocation4 + $0x98] sm:$0xff]
    %v161 = vld [vmem:[#allocation4 + $0xa0] sm:$0xff]
    %v162 = vld [vmem:[#allocation4 + $0xa8] sm:$0xff]
    %v163 = vld [vmem:[#allocation4 + $0xb0] sm:$0xff]
    %v164 = vld [vmem:[#allocation4 + $0xb8] sm:$0xff]
    %v165 = vld [vmem:[#allocation4 + $0xc0] sm:$0xff]
    %v166 = vld [vmem:[#allocation4 + $0xc8] sm:$0xff]
    %v167 = vld [vmem:[#allocation4 + $0xd0] sm:$0xff]
    %v168 = vld [vmem:[#allocation4 + $0xd8] sm:$0xff]
    %v169 = vld [vmem:[#allocation4 + $0xe0] sm:$0xff]
    %v170 = vld [vmem:[#allocation4 + $0xe8] sm:$0xff]
    %v171 = vld [vmem:[#allocation4 + $0xf0] sm:$0xff]
    %v172 = vld [vmem:[#allocation4 + $0xf8] sm:$0xff]
    %v173 = vld [vmem:[#allocation4 + $0x100] sm:$0xff]
    %v174 = vld [vmem:[#allocation4 + $0x108] sm:$0xff]
    %v175 = vld [vmem:[#allocation4 + $0x110] sm:$0xff]
    %v176 = vld [vmem:[#allocation4 + $0x118] sm:$0xff]
    %v177 = vld [vmem:[#allocation4 + $0x120] sm:$0xff]
    %v178 = vld [vmem:[#allocation4 + $0x128] sm:$0xff]
    %v179 = vld [vmem:[#allocation4 + $0x130] sm:$0xff]
    %v180 = vld [vmem:[#allocation4 + $0x138] sm:$0xff]
    %v181 = vld [vmem:[#allocation4 + $0x140] sm:$0xff]
    %v182 = vld [vmem:[#allocation4 + $0x148] sm:$0xff]
    %v183 = vld [vmem:[#allocation4 + $0x150] sm:$0xff]
    %v184 = vld [vmem:[#allocation4 + $0x158] sm:$0xff]
    %v185 = vld [vmem:[#allocation4 + $0x160] sm:$0xff]
    %v186 = vld [vmem:[#allocation4 + $0x168] sm:$0xff]
    %v187 = vld [vmem:[#allocation4 + $0x170] sm:$0xff]
    %v188 = vld [vmem:[#allocation4 + $0x178] sm:$0xff]
    %v189 = vld [vmem:[#allocation6] sm:$0xff]
    %v190 = vld [vmem:[#allocation6 + $0x8] sm:$0xf]
    %v193 = vlaneseq
    %v194 = vshrl.u32 %v193, 7
    %v195 = vsub.s32 0, %v194
    %v196 = vrot.slane %v189, %v195
    %v197 = vlaneseq
    %v198 = vshrl.u32 %v197, 7
    %v199 = vsub.s32 4, %v198
    %v200 = vrot.slane %v189, %v199
    %v201 = vlaneseq
    %v202 = vshrl.u32 %v201, 7
    %v203 = vsub.s32 0, %v202
    %v204 = vrot.slane %v190, %v203
    %208 = vmatprep.subr.mxu0 %v187
    %209 = vmatpush1.msra.mxu0 %v186
    %210 = vmatprep.subr.mxu0 %v184
    %211 = vmatpush1.msra.mxu0 %v183
    %212 = vmatprep.subr.mxu0 %v181
    %213 = vmatpush1.msra.mxu0 %v180
    %214 = vmatprep.subr.mxu0 %v178
    %215 = vmatpush1.msra.mxu0 %v177
    %216 = vmatprep.subr.mxu0 %v175
    %217 = vmatpush1.msra.mxu0 %v174
    %218 = vmatprep.subr.mxu0 %v172
    %219 = vmatpush1.msra.mxu0 %v171
    %220 = vmatprep.subr.mxu0 %v169
    %221 = vmatpush1.msra.mxu0 %v168
    %222 = vmatprep.subr.mxu0 %v166
    %223 = vmatpush1.msra.mxu0 %v165
    %224 = vmatprep.subr.mxu0 %v163
    %225 = vmatpush1.msra.mxu0 %v162
    %226 = vmatprep.subr.mxu0 %v160
    %227 = vmatpush1.msra.mxu0 %v159
    %228 = vmatprep.subr.mxu0 %v157
    %229 = vmatpush1.msra.mxu0 %v156
    %230 = vmatprep.subr.mxu0 %v154
    %231 = vmatpush1.msra.mxu0 %v153
    %232 = vmatprep.subr.mxu0 %v151
    %233 = vmatpush1.msra.mxu0 %v150
    %234 = vmatprep.subr.mxu0 %v148
    %235 = vmatpush1.msra.mxu0 %v147
    %236 = vmatprep.subr.mxu0 %v145
    %237 = vmatpush1.msra.mxu0 %v144
    %238 = vmatprep.subr.mxu0 %v142
    %239 = vmatpush1.msra.mxu0 %v141
    %240 = vmatprep.subr.mxu0 0.0
    %241 = vmatpush2.msra.mxu0 0.0
    %242 = vmatprep.subr.mxu0 0.0
    %243 = vmatpush2.msra.mxu0 0.0
    %244 = vmatprep.subr.mxu0 0.0
    %245 = vmatpush2.msra.mxu0 0.0
    %246 = vmatprep.subr.mxu0 0.0
    %247 = vmatpush2.msra.mxu0 0.0
    %248 = vmatprep.subr.mxu0 0.0
    %249 = vmatpush2.msra.mxu0 0.0
    %250 = vmatprep.subr.mxu0 0.0
    %251 = vmatpush2.msra.mxu0 0.0
    %252 = vmatprep.subr.mxu0 0.0
    %253 = vmatpush2.msra.mxu0 0.0
    %254 = vmatprep.subr.mxu0 0.0
    %255 = vmatpush2.msra.mxu0 0.0
    %256 = vmatprep.subr.mxu0 0.0
    %257 = vmatpush2.msra.mxu0 0.0
    %258 = vmatprep.subr.mxu0 0.0
    %259 = vmatpush2.msra.mxu0 0.0
    %260 = vmatprep.subr.mxu0 0.0
    %261 = vmatpush2.msra.mxu0 0.0
    %262 = vmatprep.subr.mxu0 0.0
    %263 = vmatpush2.msra.mxu0 0.0
    %264 = vmatprep.subr.mxu0 0.0
    %265 = vmatpush2.msra.mxu0 0.0
    %266 = vmatprep.subr.mxu0 0.0
    %267 = vmatpush2.msra.mxu0 0.0
    %268 = vmatprep.subr.mxu0 0.0
    %269 = vmatpush2.msra.mxu0 0.0
    %270 = vmatprep.subr.mxu0 0.0
    %271 = vmatpush2.msra.mxu0 0.0
    %272 = vmatprep.mubr.f32.mxu0 0.0
    %273 = vmatmul.mubr.f32.gmra.mxu0 %v140
    %v274 = vpop.f32.mrf.mxu0
    %v275 = vadd.f32 %v196, %v274
    %v276 = vpop.f32.mrf.mxu0
    %v277 = vadd.f32 %v200, %v276
    %278 = vdwg.mxu0
    %279 = vmatprep.subr.mxu0 0.0
    %280 = vmatpush1.msra.mxu0 %v188
    %281 = vmatprep.subr.mxu0 0.0
    %282 = vmatpush1.msra.mxu0 %v185
    %283 = vmatprep.subr.mxu0 0.0
    %284 = vmatpush1.msra.mxu0 %v182
    %285 = vmatprep.subr.mxu0 0.0
    %286 = vmatpush1.msra.mxu0 %v179
    %287 = vmatprep.subr.mxu0 0.0
    %288 = vmatpush1.msra.mxu0 %v176
    %289 = vmatprep.subr.mxu0 0.0
    %290 = vmatpush1.msra.mxu0 %v173
    %291 = vmatprep.subr.mxu0 0.0
    %292 = vmatpush1.msra.mxu0 %v170
    %293 = vmatprep.subr.mxu0 0.0
    %294 = vmatpush1.msra.mxu0 %v167
    %295 = vmatprep.subr.mxu0 0.0
    %296 = vmatpush1.msra.mxu0 %v164
    %297 = vmatprep.subr.mxu0 0.0
    %298 = vmatpush1.msra.mxu0 %v161
    %299 = vmatprep.subr.mxu0 0.0
    %300 = vmatpush1.msra.mxu0 %v158
    %301 = vmatprep.subr.mxu0 0.0
    %302 = vmatpush1.msra.mxu0 %v155
    %303 = vmatprep.subr.mxu0 0.0
    %304 = vmatpush1.msra.mxu0 %v152
    %305 = vmatprep.subr.mxu0 0.0
    %306 = vmatpush1.msra.mxu0 %v149
    %307 = vmatprep.subr.mxu0 0.0
    %308 = vmatpush1.msra.mxu0 %v146
    %309 = vmatprep.subr.mxu0 0.0
    %310 = vmatpush1.msra.mxu0 %v143
    %311 = vmatprep.subr.mxu0 0.0
    %312 = vmatpush2.msra.mxu0 0.0
    %313 = vmatprep.subr.mxu0 0.0
    %314 = vmatpush2.msra.mxu0 0.0
    %315 = vmatprep.subr.mxu0 0.0
    %316 = vmatpush2.msra.mxu0 0.0
    %317 = vmatprep.subr.mxu0 0.0
    %318 = vmatpush2.msra.mxu0 0.0
    %319 = vmatprep.subr.mxu0 0.0
    %320 = vmatpush2.msra.mxu0 0.0
    %321 = vmatprep.subr.mxu0 0.0
    %322 = vmatpush2.msra.mxu0 0.0
    %323 = vmatprep.subr.mxu0 0.0
    %324 = vmatpush2.msra.mxu0 0.0
    %325 = vmatprep.subr.mxu0 0.0
    %326 = vmatpush2.msra.mxu0 0.0
    %327 = vmatprep.subr.mxu0 0.0
    %328 = vmatpush2.msra.mxu0 0.0
    %329 = vmatprep.subr.mxu0 0.0
    %330 = vmatpush2.msra.mxu0 0.0
    %331 = vmatprep.subr.mxu0 0.0
    %332 = vmatpush2.msra.mxu0 0.0
    %333 = vmatprep.subr.mxu0 0.0
    %334 = vmatpush2.msra.mxu0 0.0
    %335 = vmatprep.subr.mxu0 0.0
    %336 = vmatpush2.msra.mxu0 0.0
    %337 = vmatprep.subr.mxu0 0.0
    %338 = vmatpush2.msra.mxu0 0.0
    %339 = vmatprep.subr.mxu0 0.0
    %340 = vmatpush2.msra.mxu0 0.0
    %341 = vmatprep.subr.mxu0 0.0
    %342 = vmatpush2.msra.mxu0 0.0
    %343 = vmatprep.mubr.f32.mxu0 0.0
    %344 = vmatmul.mubr.f32.gmra.mxu0 %v140
    %v345 = vpop.f32.mrf.mxu0
    %v346 = vadd.f32 %v204, %v345
    %v347 = vpop.f32.mrf.mxu0
    %348 = vdwg.mxu0
    %v349 = vlaneseq
    %v350 = vshrl.u32 %v349, 7
    %v351 = vsub.s32 1, %v350
    %v352 = vrot.slane %v189, %v351
    %v353 = vlaneseq
    %v354 = vshrl.u32 %v353, 7
    %v355 = vsub.s32 5, %v354
    %v356 = vrot.slane %v189, %v355
    %v357 = vlaneseq
    %v358 = vshrl.u32 %v357, 7
    %v359 = vsub.s32 1, %v358
    %v360 = vrot.slane %v190, %v359
    %v364 = vmul.f32 %v275, %v352
    %v365 = vmul.f32 %v277, %v356
    %v366 = vmul.f32 %v346, %v360
    %v367 = vrot.slane %v189, 7
    %v368 = vrot.slane %v190, 7
    %v371 = vmul.f32 %v189, %v367
    %v372 = vmul.f32 %v190, %v368
    %v373 = vsub.f32 1.0, %v189
    %v374 = vsub.f32 1.0, %v190
    %v375 = vadd.f32 %v371, %v373
    %v376 = vadd.f32 %v372, %v374
    %v379 = vlaneseq
    %v380 = vshrl.u32 %v379, 7
    %v381 = vsub.s32 3, %v380
    %v382 = vrot.slane %v375, %v381
    %v383 = vlaneseq
    %v384 = vshrl.u32 %v383, 7
    %v385 = vsub.s32 7, %v384
    %v386 = vrot.slane %v375, %v385
    %v387 = vlaneseq
    %v388 = vshrl.u32 %v387, 7
    %v389 = vsub.s32 3, %v388
    %v390 = vrot.slane %v376, %v389
    %v394 = vmul.f32 %v364, %v382
    %v395 = vmul.f32 %v365, %v386
    %v396 = vmul.f32 %v366, %v390
    %v400 = vcombine.low %v394, %v395
    %v401 = vrot.slane %v400, 6
    %v402 = vrot.slane %v396, 6
    %v405 = vadd.f32 %v189, %v401
    %v406 = vadd.f32 %v190, %v402
    %v410 = vunpack.c.l.s4 1966171168
    %v411 = vunpack.c.0.s8 %v410
    %v412 = vlaneseq
    %v413 = vshrl.u32 %v412, 7
    %v414 = vsub.s32 %v411, %v413
    %v415 = vrot.slane %v405, %v414
    %v417 = vunpack.c.l.s4 1966171168
    %v418 = vunpack.c.0.s8 %v417
    %v419 = vlaneseq
    %v420 = vshrl.u32 %v419, 7
    %v421 = vsub.s32 %v418, %v420
    %v422 = vrot.slane %v406, %v421
    %v423 = vcombine.low %v415, %v422
    %v425 = vunpack.c.l.s4 1966171168
    %v426 = vunpack.c.0.s8 %v425
    %v427 = vlaneseq
    %v428 = vshrl.u32 %v427, 7
    %v429 = vsub.s32 %v426, %v428
    %v430 = vrot.slane %v423, %v429
    %v431 = vcombine.high %v430, %v430
    %v433 = vlaneseq
    %vm434 = vcmp.ge.s32.totalorder %v433, 0
    %vm435 = vcmp.lt.s32.totalorder %v433, 384
    %vm436 = vmand %vm434, %vm435
    %437 = vst.msk [vmem:[%s4] sm:$0x7] %vm436, %v431
    // Predicated region
    $region30: #{fwd.1} parent=1 // pred_check
      _
    $region31: #{fwd.1} parent=1 // pred_check_branch
      %439 = sbr.rel (0) target = $region33
    $region32: #{fwd.1} parent=1 // pred_region
      _
    $region33: #{fwd.1} parent=1 // pred_fallthru
      _
    // Predicated region
    $region34: #{fwd.1} parent=1 // pred_check
      _
    $region35: #{fwd.1} parent=1 // pred_check_branch
      %441 = sbr.rel (0) target = $region37
    $region36: #{fwd.1} parent=1 // pred_region
      _
    $region37: #{fwd.1} parent=1 // pred_fallthru
      _
    %442 = vsyncpa [#allocation3], 1
    %443 = vsyncpa [#allocation5], 1

</llo_original>
